<compile_context>
chip_gen: v6e
topology: v6e:2x2x1
jax: 0.10.0
libtpu: 0.0.40
codegen_flags: <defaults>
</compile_context>

<pallas_src>
import functools

import jax
import jax.numpy as jnp
from jax import lax
from jax.experimental import pallas as pl
from jax.experimental.pallas import tpu as pltpu


def _round_up(x, m):
    return (x + m - 1) // m * m


def _cdiv(a, b):
    return (a + b - 1) // b


def _vmem_bytes(tm, tn, d):
    # xi + xj + sq_i + sq_j + out tiles, f32, x2 for Pallas double-buffering.
    per_buf = (tm * d + tn * d + tm + tn + tm * tn) * 4
    return 2 * per_buf


def _rbf_kernel(neg_inv_bw_ref, sq_i_ref, sq_j_ref, xi_ref, xj_ref, out_ref,
                *, mults, geometric2):
    """One (TM, TN) output tile of sum_k exp(-L2 / (bw * mult_k))."""
    xi = xi_ref[...]                                           # (TM, D) f32
    xj = xj_ref[...]                                           # (TN, D) f32

    # Gram tile on the MXU, contracting the feature (last) dims directly.
    gram = lax.dot_general(
        xi, xj,
        dimension_numbers=(((1,), (1,)), ((), ())),
        preferred_element_type=jnp.float32,
    )                                                          # (TM, TN)

    # Precomputed norms stream in as (TM,1) and (1,TN); pure broadcast adds.
    l2 = jnp.maximum(sq_i_ref[...] + sq_j_ref[...] - 2.0 * gram, 0.0)

    neg_inv_bw = neg_inv_bw_ref[0]                             # SMEM scalar (-1/bw)
    n_kernels = len(mults)

    if geometric2:
        # mult_k = 2**e, e in [-(n//2), ..., n-1-n//2]; term = t0 ** (2**-e).
        t0 = jnp.exp(l2 * neg_inv_bw)                          # e = 0 (1 EUP exp)
        acc = t0
        cur = t0
        for _ in range(n_kernels // 2):                        # mults 1/2, 1/4, ...
            cur = cur * cur                                    # VPU
            acc = acc + cur
        cur = t0
        for _ in range(n_kernels - 1 - n_kernels // 2):        # mults 2, 4, ...
            cur = jnp.sqrt(cur)                                # EUP (safe at 0)
            acc = acc + cur
    else:
        # Generic path: one scalar-broadcast mul + one exp per multiplier.
        acc = jnp.zeros_like(l2)
        for m in mults:
            acc = acc + jnp.exp(l2 * (neg_inv_bw * jnp.float32(1.0 / m)))

    out_ref[...] = acc.astype(out_ref.dtype)


def rbf_forward(x, *, n_kernels=5, mul_factor=2.0, bandwidth=None,
                tile=512, out_dtype=jnp.float32):
    """JAX/Pallas equivalent of RBF.forward(X) for X of shape (N, D)."""
    x = x.astype(jnp.float32)
    n, d = x.shape

    # Deterministic "parameter" init, mirrors torch __init__:
    #   mul_factor ** (arange(n_kernels) - n_kernels // 2)
    mults = tuple(
        float(mul_factor) ** (k - n_kernels // 2) for k in range(n_kernels)
    )

    # Row squared norms (O(N*D)) — reused by every tile instead of in-kernel
    # XLU reductions; also feeds the bandwidth closed form.
    sq = jnp.sum(x * x, axis=-1)
    sq_col = sq.reshape(n, 1)
    sq_row = sq.reshape(1, n)

    if bandwidth is None:
        # sum_ij ||xi - xj||^2 = 2*N*sum_i ||xi - mean||^2  (centered form:
        # translation-invariant, avoids f32 cancellation for shifted data).
        xc = x - jnp.mean(x, axis=0, keepdims=True)
        sum_l2 = 2.0 * n * jnp.sum(xc * xc)
        denom = max(n * n - n, 1)          # guard N == 1 (reference divides by 0)
        bw = sum_l2 / jnp.float32(denom)
    else:
        bw = jnp.float32(bandwidth)
    neg_inv_bw = (-1.0 / bw).reshape(1).astype(jnp.float32)    # scalar-prefetch arg

    # ---- Tile selection (no padding; ragged edge blocks are masked) ----
    if n > tile:
        tm = tn = tile
        # Shrink (512 -> 256 -> 128) if the per-step footprint would blow the
        # scoped-VMEM budget (large D).  Stays a multiple of 128 -> lane-dense.
        while tm > 128 and _vmem_bytes(tm, tn, d) > (28 << 20):
            tm //= 2
            tn //= 2
    else:
        tn = n                                       # full extent (always legal)
        # Split the row axis so small problems still expose >=2 "parallel"
        # blocks for v7x's two TensorCores.
        tm = n if n < 8 else _round_up(_cdiv(n, 2), 8)
    # TODO(synk): for extremely large D where even (128, D) blocks do not fit
    # VMEM, add a third "arbitrary" grid axis over D with a gram accumulator.

    grid = (_cdiv(n, tm), _cdiv(n, tn))
    vmem_limit = int(min(max(4 * _vmem_bytes(tm, tn, d), 32 << 20), 56 << 20))

    kernel = functools.partial(
        _rbf_kernel, mults=mults, geometric2=(float(mul_factor) == 2.0)
    )

    out = pl.pallas_call(
        kernel,
        out_shape=jax.ShapeDtypeStruct((n, n), out_dtype),
        grid_spec=pltpu.PrefetchScalarGridSpec(
            num_scalar_prefetch=1,
            grid=grid,
            in_specs=[
                pl.BlockSpec((tm, 1), lambda i, j, s: (i, 0)),   # ||x_i||^2 column
                pl.BlockSpec((1, tn), lambda i, j, s: (0, j)),   # ||x_j||^2 row
                pl.BlockSpec((tm, d), lambda i, j, s: (i, 0)),   # row block X[i]
                pl.BlockSpec((tn, d), lambda i, j, s: (j, 0)),   # col block X[j]
            ],
            out_specs=pl.BlockSpec((tm, tn), lambda i, j, s: (i, j)),
        ),
        compiler_params=pltpu.CompilerParams(
            dimension_semantics=("parallel", "parallel"),
            vmem_limit_bytes=vmem_limit,
        ),
    )(neg_inv_bw, sq_col, sq_row, x, x)
    return out


def _rbf_reference(x, *, n_kernels=5, mul_factor=2.0, bandwidth=None):
    """Pure-JAX reference (mirrors the torch module) for a sanity check."""
    x = x.astype(jnp.float32)
    diffs = x[:, None, :] - x[None, :, :]
    l2 = jnp.sum(diffs * diffs, axis=-1)
    n = x.shape[0]
    bw = jnp.sum(l2) / (n * n - n) if bandwidth is None else jnp.float32(bandwidth)
    mults = jnp.asarray(
        [float(mul_factor) ** (k - n_kernels // 2) for k in range(n_kernels)],
        dtype=jnp.float32,
    )
    return jnp.sum(jnp.exp(-l2[None, ...] / (bw * mults)[:, None, None]), axis=0)


if __name__ == "__main__":
    key = jax.random.PRNGKey(0)
    N, D = 8, 32                                   # small: 8 samples, 32 features
    x = jax.random.normal(key, (N, D), dtype=jnp.float32)

    out = rbf_forward(x, n_kernels=5, mul_factor=2.0, bandwidth=None)
    out = jax.block_until_ready(out)
    ref = _rbf_reference(x, n_kernels=5, mul_factor=2.0, bandwidth=None)
    assert out.shape == (N, N)
    assert jnp.allclose(out, ref, atol=1e-4, rtol=1e-4), "mismatch vs reference"

    # Fixed-bandwidth branch + non-8/128-aligned N (ragged edge blocks).
    x2 = jax.random.normal(jax.random.PRNGKey(1), (12, 16), dtype=jnp.float32)
    out2 = jax.block_until_ready(rbf_forward(x2, bandwidth=1.5))
    ref2 = _rbf_reference(x2, bandwidth=1.5)
    assert jnp.allclose(out2, ref2, atol=1e-4, rtol=1e-4), "mismatch (fixed bw)"

    # Generic (non power-of-2 mul_factor) path.
    out3 = jax.block_until_ready(rbf_forward(x2, n_kernels=3, mul_factor=1.5))
    ref3 = _rbf_reference(x2, n_kernels=3, mul_factor=1.5)
    assert jnp.allclose(out3, ref3, atol=1e-4, rtol=1e-4), "mismatch (mul=1.5)"

    print("KERNEL_OK")
</pallas_src>

<mosaic_0001>
module attributes {stable_mosaic.version = 11 : i64} {
  func.func @_rbf_kernel(%arg0: i32, %arg1: i32, %arg2: memref<1xf32, #tpu.memory_space<smem>>, %arg3: memref<8x1xf32, #tpu.memory_space<vmem>>, %arg4: memref<1x8xf32, #tpu.memory_space<vmem>>, %arg5: memref<8x32xf32, #tpu.memory_space<vmem>>, %arg6: memref<8x32xf32, #tpu.memory_space<vmem>>, %arg7: memref<8x8xf32, #tpu.memory_space<vmem>>) attributes {dimension_semantics = [#tpu.dimension_semantics<parallel>, #tpu.dimension_semantics<parallel>], iteration_bounds = array<i64: 1, 1>, scalar_prefetch = 1 : i64, scratch_operands = 0 : i64, tpu.core_type = #tpu.core_type<tc>, window_params = [{transform_indices = @transform_0, window_bounds = array<i64: 8, 1>}, {transform_indices = @transform_1, window_bounds = array<i64: 1, 8>}, {transform_indices = @transform_2, window_bounds = array<i64: 8, 32>}, {transform_indices = @transform_3, window_bounds = array<i64: 8, 32>}, {transform_indices = @transform_4, window_bounds = array<i64: 8, 8>}]} {
    %c0 = arith.constant 0 : index
    %c0_0 = arith.constant 0 : index
    %0 = vector.load %arg5[%c0, %c0_0] : memref<8x32xf32, #tpu.memory_space<vmem>>, vector<8x32xf32>
    %c0_1 = arith.constant 0 : index
    %c0_2 = arith.constant 0 : index
    %1 = vector.load %arg6[%c0_1, %c0_2] : memref<8x32xf32, #tpu.memory_space<vmem>>, vector<8x32xf32>
    %cst = arith.constant dense<0.000000e+00> : vector<8x8xf32>
    %2 = tpu.matmul %0, %1, %cst {dimension_numbers = #tpu.dot_dimension_numbers<[1], [1], [0], [0], [0, 0, 1, 0], [], []>} : vector<8x32xf32>, vector<8x32xf32>, vector<8x8xf32> -> vector<8x8xf32>
    %c0_3 = arith.constant 0 : index
    %c0_4 = arith.constant 0 : index
    %3 = vector.load %arg3[%c0_3, %c0_4] : memref<8x1xf32, #tpu.memory_space<vmem>>, vector<8x1xf32>
    %c0_5 = arith.constant 0 : index
    %c0_6 = arith.constant 0 : index
    %4 = vector.load %arg4[%c0_5, %c0_6] : memref<1x8xf32, #tpu.memory_space<vmem>>, vector<1x8xf32>
    %5 = vector.broadcast %3 : vector<8x1xf32> to vector<8x8xf32>
    %6 = vector.broadcast %4 : vector<1x8xf32> to vector<8x8xf32>
    %7 = arith.addf %5, %6 : vector<8x8xf32>
    %cst_7 = arith.constant 2.000000e+00 : f32
    %8 = vector.broadcast %cst_7 : f32 to vector<8x8xf32>
    %9 = arith.mulf %8, %2 : vector<8x8xf32>
    %10 = arith.subf %7, %9 : vector<8x8xf32>
    %cst_8 = arith.constant 0.000000e+00 : f32
    %11 = vector.broadcast %cst_8 : f32 to vector<8x8xf32>
    %12 = arith.maximumf %10, %11 : vector<8x8xf32>
    %c0_9 = arith.constant 0 : index
    %13 = memref.load %arg2[%c0_9] : memref<1xf32, #tpu.memory_space<smem>>
    %14 = vector.broadcast %13 : f32 to vector<8x8xf32>
    %15 = arith.mulf %12, %14 : vector<8x8xf32>
    %16 = math.exp %15 : vector<8x8xf32>
    %17 = arith.mulf %16, %16 : vector<8x8xf32>
    %18 = arith.addf %16, %17 : vector<8x8xf32>
    %19 = arith.mulf %17, %17 : vector<8x8xf32>
    %20 = arith.addf %18, %19 : vector<8x8xf32>
    %21 = math.sqrt %16 : vector<8x8xf32>
    %22 = arith.addf %20, %21 : vector<8x8xf32>
    %23 = math.sqrt %21 : vector<8x8xf32>
    %24 = arith.addf %22, %23 : vector<8x8xf32>
    %c0_10 = arith.constant 0 : index
    %c0_11 = arith.constant 0 : index
    %25 = vector.load %arg7[%c0_10, %c0_11] : memref<8x8xf32, #tpu.memory_space<vmem>>, vector<8x8xf32>
    tpu.vector_store %arg7[%c0_10, %c0_11], %24 {strides = array<i32>} : memref<8x8xf32, #tpu.memory_space<vmem>>, vector<8x8xf32>,
    return
  }
  func.func @transform_0(%arg0: i32, %arg1: i32, %arg2: memref<1xf32, #tpu.memory_space<smem>>) -> (i32, i32) {
    %c0_i32 = arith.constant 0 : i32
    %c0_i32_0 = arith.constant 0 : i32
    return %arg0, %c0_i32 : i32, i32
  }
  func.func @transform_1(%arg0: i32, %arg1: i32, %arg2: memref<1xf32, #tpu.memory_space<smem>>) -> (i32, i32) {
    %c0_i32 = arith.constant 0 : i32
    %c0_i32_0 = arith.constant 0 : i32
    return %c0_i32, %arg1 : i32, i32
  }
  func.func @transform_2(%arg0: i32, %arg1: i32, %arg2: memref<1xf32, #tpu.memory_space<smem>>) -> (i32, i32) {
    %c0_i32 = arith.constant 0 : i32
    %c0_i32_0 = arith.constant 0 : i32
    return %arg0, %c0_i32 : i32, i32
  }
  func.func @transform_3(%arg0: i32, %arg1: i32, %arg2: memref<1xf32, #tpu.memory_space<smem>>) -> (i32, i32) {
    %c0_i32 = arith.constant 0 : i32
    %c0_i32_0 = arith.constant 0 : i32
    return %arg1, %c0_i32 : i32, i32
  }
  func.func @transform_4(%arg0: i32, %arg1: i32, %arg2: memref<1xf32, #tpu.memory_space<smem>>) -> (i32, i32) {
    %c0_i32 = arith.constant 0 : i32
    return %arg0, %arg1 : i32, i32
  }
}

</mosaic_0001>

<llo_original>
// kernel: tpu_custom_call.1
$region0: #{tpu_custom_call.1}
  #allocation0 [shape = 'u32[]', space=smem, size = 0x4, offset = 0x4, fixed_abs, tag = 'smem constant byte address 0x4 - core index']
  #allocation1 [shape = 'u32[144,128]{1,0:T(1,128)}', space=vmem, size = 0x12000, scoped, tag = 'internal scratch']
  #allocation2 [shape = 's32[1]{0}', space=sflag, size = 0x4, scoped, tag = 'scoped memory for tpu_custom_call.1']
  #allocation3 [shape = 'f32[1]{0:T(128)S(6)}', space=smem, size = 0x200, scoped, tag = 'prefetched SMEM operand 0']
  %s0 = inlined_call_operand.<no memory space> [shape: f32[1], index: 0, kind: input, shape index: {}]
  %s1 = inlined_call_operand.vmem [shape: f32[8,1], index: 1, kind: input, shape index: {}]
  %s2 = inlined_call_operand.hbm [shape: f32[1,8], index: 2, kind: input, shape index: {}]
  %s3 = inlined_call_operand.vmem [shape: f32[8,32], index: 3, kind: input, shape index: {}]
  %s4 = inlined_call_operand.vmem [shape: f32[8,32], index: 4, kind: input, shape index: {}]
  %s5 = inlined_call_operand.hbm [shape: f32[8,8], index: 5, kind: output, shape index: {}]
  %s6 = sld [smem:[#allocation0]]
  $region30: #{tpu_custom_call.1} parent=0
    _
  %s8 = ssub.s32 1, %s6
  %s9 = scalar_select 0, %s8, %s6
  %10 = sst [smem:[#allocation3]] %s0
  $region1: #{tpu_custom_call.1} parent=0
    #allocation4 [shape = 'u8[512]{0}', space=vmem, size = 0x400, scoped, tag = 'input window, operand 2, single buffered']
    #allocation5 [shape = 's32[1]{0}', space=sflag, size = 0x4, scoped, tag = 'scoped memory for tpu_custom_call.1']
    #allocation6 [shape = 's32[1]{0}', space=sflag, size = 0x4, scoped, tag = 'scoped memory for tpu_custom_call.1']
    #allocation7 [shape = 'u8[4096]{0}', space=vmem, size = 0x1000, scoped, tag = 'output window, operand 0, single buffered']
    %11 = vsyncpa [#allocation5], 0
    %12 = vsyncpa [#allocation6], 0
    // Predicated region
    $region2: #{tpu_custom_call.1} parent=1 // pred_check
      _
    $region3: #{tpu_custom_call.1} parent=1 // pred_check_branch
      %14 = sbr.rel (0) target = $region5
    $region4: #{tpu_custom_call.1} parent=1 // pred_region
      _
    $region5: #{tpu_custom_call.1} parent=1 // pred_fallthru
      _
    // Predicated region
    $region6: #{tpu_custom_call.1} parent=1 // pred_check
      _
    $region7: #{tpu_custom_call.1} parent=1 // pred_check_branch
      %16 = sbr.rel (0) target = $region9
    $region8: #{tpu_custom_call.1} parent=1 // pred_region
      %s18 = ssub.s32 16, 16
      %19 = vsyncadd [#allocation5], %s18
      %s21 = sshll.u32 [#allocation4], 4
      %s22 = int_to_ptr.vmem [resolvable:$true] %s21
      %24 = dma.hbm_to_vmem [thread:$0]  %s2, 16, %s22, [#allocation5]
    $region9: #{tpu_custom_call.1} parent=1 // pred_fallthru
      _
    // Predicated region
    $region10: #{tpu_custom_call.1} parent=1 // pred_check
      _
    $region11: #{tpu_custom_call.1} parent=1 // pred_check_branch
      %26 = sbr.rel (0) target = $region13
    $region12: #{tpu_custom_call.1} parent=1 // pred_region
      _
    $region13: #{tpu_custom_call.1} parent=1 // pred_fallthru
      _
    // Predicated region
    $region14: #{tpu_custom_call.1} parent=1 // pred_check
      _
    $region15: #{tpu_custom_call.1} parent=1 // pred_check_branch
      %28 = sbr.rel (0) target = $region17
    $region16: #{tpu_custom_call.1} parent=1 // pred_region
      _
    $region17: #{tpu_custom_call.1} parent=1 // pred_fallthru
      _
    // Predicated region
    $region18: #{tpu_custom_call.1} parent=1 // pred_check
      _
    $region19: #{tpu_custom_call.1} parent=1 // pred_check_branch
      %30 = sbr.rel (0) target = $region21
    $region20: #{tpu_custom_call.1} parent=1 // pred_region
      %31 = dma.done [#allocation5], 16
    $region21: #{tpu_custom_call.1} parent=1 // pred_fallthru
      _
    %v32 = vld [vmem:[%s3] sm:$0xff]
    %v33 = vld [vmem:[%s4] sm:$0xff]
    %vm34 = vcmask 261120
    %v36 = vsel %vm34, %v32, 0
    %v39 = vsel %vm34, %v33, 0
    %41 = vmatprep.subr.mxu0 0.0
    %42 = vmatpush1.xpose.msra.mxu0 0.0
    %43 = vmatprep.subr.mxu0 0.0
    %44 = vmatpush1.xpose.msra.mxu0 0.0
    %45 = vmatprep.subr.mxu0 0.0
    %46 = vmatpush1.xpose.msra.mxu0 0.0
    %47 = vmatprep.subr.mxu0 0.0
    %48 = vmatpush1.xpose.msra.mxu0 0.0
    %49 = vmatprep.subr.mxu0 0.0
    %50 = vmatpush1.xpose.msra.mxu0 0.0
    %51 = vmatprep.subr.mxu0 0.0
    %52 = vmatpush1.xpose.msra.mxu0 0.0
    %53 = vmatprep.subr.mxu0 0.0
    %54 = vmatpush1.xpose.msra.mxu0 0.0
    %55 = vmatprep.subr.mxu0 0.0
    %56 = vmatpush1.xpose.msra.mxu0 0.0
    %57 = vmatprep.subr.mxu0 0.0
    %58 = vmatpush1.xpose.msra.mxu0 0.0
    %59 = vmatprep.subr.mxu0 0.0
    %60 = vmatpush1.xpose.msra.mxu0 0.0
    %61 = vmatprep.subr.mxu0 0.0
    %62 = vmatpush1.xpose.msra.mxu0 0.0
    %63 = vmatprep.subr.mxu0 0.0
    %64 = vmatpush1.xpose.msra.mxu0 0.0
    %65 = vmatprep.subr.mxu0 0.0
    %66 = vmatpush1.xpose.msra.mxu0 0.0
    %67 = vmatprep.subr.mxu0 0.0
    %68 = vmatpush1.xpose.msra.mxu0 0.0
    %69 = vmatprep.subr.mxu0 0.0
    %70 = vmatpush1.xpose.msra.mxu0 0.0
    %71 = vmatprep.subr.mxu0 0.0
    %72 = vmatpush1.xpose.msra.mxu0 %v39
    %73 = vmatprep.subr.mxu0 0.0
    %74 = vmatpush2.xpose.msra.mxu0 0.0
    %75 = vmatprep.subr.mxu0 0.0
    %76 = vmatpush2.xpose.msra.mxu0 0.0
    %77 = vmatprep.subr.mxu0 0.0
    %78 = vmatpush2.xpose.msra.mxu0 0.0
    %79 = vmatprep.subr.mxu0 0.0
    %80 = vmatpush2.xpose.msra.mxu0 0.0
    %81 = vmatprep.subr.mxu0 0.0
    %82 = vmatpush2.xpose.msra.mxu0 0.0
    %83 = vmatprep.subr.mxu0 0.0
    %84 = vmatpush2.xpose.msra.mxu0 0.0
    %85 = vmatprep.subr.mxu0 0.0
    %86 = vmatpush2.xpose.msra.mxu0 0.0
    %87 = vmatprep.subr.mxu0 0.0
    %88 = vmatpush2.xpose.msra.mxu0 0.0
    %89 = vmatprep.subr.mxu0 0.0
    %90 = vmatpush2.xpose.msra.mxu0 0.0
    %91 = vmatprep.subr.mxu0 0.0
    %92 = vmatpush2.xpose.msra.mxu0 0.0
    %93 = vmatprep.subr.mxu0 0.0
    %94 = vmatpush2.xpose.msra.mxu0 0.0
    %95 = vmatprep.subr.mxu0 0.0
    %96 = vmatpush2.xpose.msra.mxu0 0.0
    %97 = vmatprep.subr.mxu0 0.0
    %98 = vmatpush2.xpose.msra.mxu0 0.0
    %99 = vmatprep.subr.mxu0 0.0
    %100 = vmatpush2.xpose.msra.mxu0 0.0
    %101 = vmatprep.subr.mxu0 0.0
    %102 = vmatpush2.xpose.msra.mxu0 0.0
    %103 = vmatprep.subr.mxu0 0.0
    %104 = vmatpush2.xpose.msra.mxu0 0.0
    %105 = vmatprep.mubr.f32.mxu0 0.0
    %106 = vmatmul.mubr.f32.gmra.mxu0 %v36
    %v107 = vpop.f32.mrf.mxu0
    %v108 = vadd.f32 0.0, %v107
    %v109 = vpop.f32.mrf.mxu0
    %110 = vdwg.mxu0
    %v111 = vld [vmem:[%s1] sm:$0xff]
    %v112 = vld [vmem:[#allocation4] sm:$0x1]
    %114 = vset.pattern.permute.xlu0 0
    %115 = vperm.xlu0 %114, %v111
    %v116 = vpop.permute.xlu0 %115
    %v119 = vlaneseq
    %v120 = vshrl.u32 %v119, 7
    %v121 = vsub.s32 0, %v120
    %v122 = vrot.slane %v112, %v121
    %v124 = vadd.f32 %v116, %v122
    %v125 = vmul.f32 %v108, 2.0
    %v126 = vsub.f32 %v124, %v125
    %v127 = vmax.f32 %v126, 0.0
    %s128 = sld [smem:[#allocation3]]
    %v129 = vstv %s128
    %v130 = vmul.f32 %v127, %v129
    %v131 = vmul.f32 %v130, 1.442695
    %v132 = vpow.pop %v131
    %v133 = vmul.f32 %v132, %v132
    %v134 = vadd.f32 %v132, %v133
    %v135 = vmul.f32 %v133, %v133
    %v136 = vadd.f32 %v134, %v135
    %v137 = vrsqrt.pop %v132
    %v138 = vmul.f32 %v132, %v137
    %vm139 = vcmp.eq.f32.partialorder %v132, inf
    %v140 = vsel %vm139, %v132, %v138
    %vm141 = vcmp.eq.f32.partialorder %v132, 0.0
    %v142 = vand.u32 %v132, 2147483648
    %v143 = vsel %vm141, %v142, %v140
    %v144 = vadd.f32 %v136, %v143
    %v145 = vrsqrt.pop %v143
    %v146 = vmul.f32 %v143, %v145
    %vm147 = vcmp.eq.f32.partialorder %v143, inf
    %v148 = vsel %vm147, %v143, %v146
    %vm149 = vcmp.eq.f32.partialorder %v143, 0.0
    %v150 = vand.u32 %v143, 2147483648
    %v151 = vsel %vm149, %v150, %v148
    %v152 = vadd.f32 %v144, %v151
    %vm153 = vcmask 64512
    %154 = vst.msk [vmem:[#allocation7] sm:$0xff] %vm153, %v152
    // Predicated region
    $region22: #{tpu_custom_call.1} parent=1 // pred_check
      _
    $region23: #{tpu_custom_call.1} parent=1 // pred_check_branch
      %156 = sbr.rel (0) target = $region25
    $region24: #{tpu_custom_call.1} parent=1 // pred_region
      %s158 = ssub.s32 128, 128
      %159 = vsyncadd [#allocation6], %s158
      %s161 = sshll.u32 [#allocation7], 4
      %s162 = int_to_ptr.vmem [resolvable:$true] %s161
      %164 = dma.vmem_to_hbm [thread:$0]  %s162, 128, %s5, [#allocation6]
    $region25: #{tpu_custom_call.1} parent=1 // pred_fallthru
      _
    // Predicated region
    $region26: #{tpu_custom_call.1} parent=1 // pred_check
      _
    $region27: #{tpu_custom_call.1} parent=1 // pred_check_branch
      %166 = sbr.rel (0) target = $region29
    $region28: #{tpu_custom_call.1} parent=1 // pred_region
      %167 = dma.done [#allocation6], 128
    $region29: #{tpu_custom_call.1} parent=1 // pred_fallthru
      _
    %168 = vsyncpa [#allocation5], 1
    %169 = vsyncpa [#allocation6], 1

</llo_original>
